<compile_context>
chip_gen: v5e
topology: v5e:2x2
jax: 0.10.0
libtpu: 0.0.40
codegen_flags: <defaults>
</compile_context>

<pallas_src>
import functools

import jax
import jax.numpy as jnp
from jax.experimental import pallas as pl
from jax.experimental.pallas import tpu as pltpu


def _encoder_layer_kernel(x_ref, g1_ref, b1_ref, wqkv_ref, wproj_ref,
                          g2_ref, b2_ref, w1_ref, w2_ref, o_ref,
                          *, num_heads, eps):
    x = x_ref[...].astype(jnp.float32)                      # (N, D)
    n, d = x.shape
    hd = d // num_heads
    scale = float(hd) ** -0.5

    def layer_norm(v, g, b):
        mu = jnp.mean(v, axis=-1, keepdims=True)
        vc = v - mu
        var = jnp.mean(vc * vc, axis=-1, keepdims=True)
        return vc * jax.lax.rsqrt(var + eps) * g + b

    # ---- LayerNorm 1 + multi-head self-attention + residual ----
    h = layer_norm(x, g1_ref[...], b1_ref[...])
    qkv = jnp.dot(h, wqkv_ref[...], preferred_element_type=jnp.float32)   # (N, 3D)

    attn_proj = jnp.zeros((n, d), dtype=jnp.float32)
    for hi in range(num_heads):
        q_h = qkv[:, hi * hd:(hi + 1) * hd]
        k_h = qkv[:, d + hi * hd:d + (hi + 1) * hd]
        v_h = qkv[:, 2 * d + hi * hd:2 * d + (hi + 1) * hd]
        # scores = q_h @ k_h^T without an explicit transpose (contract last dims)
        s = jax.lax.dot_general(q_h, k_h, (((1,), (1,)), ((), ())),
                                preferred_element_type=jnp.float32) * scale
        m = jnp.max(s, axis=-1, keepdims=True)
        e = jnp.exp(s - m)
        p = e / jnp.sum(e, axis=-1, keepdims=True)
        o_h = jnp.dot(p, v_h, preferred_element_type=jnp.float32)          # (N, hd)
        # fold the output projection in per head (avoids a lane-axis concatenate)
        attn_proj = attn_proj + jnp.dot(
            o_h, wproj_ref[hi * hd:(hi + 1) * hd, :],
            preferred_element_type=jnp.float32)
    x = x + attn_proj

    # ---- LayerNorm 2 + MLP (ReLU) + residual ----
    h2 = layer_norm(x, g2_ref[...], b2_ref[...])
    z = jnp.maximum(jnp.dot(h2, w1_ref[...], preferred_element_type=jnp.float32), 0.0)
    x = x + jnp.dot(z, w2_ref[...], preferred_element_type=jnp.float32)

    o_ref[...] = x.astype(o_ref.dtype)


def encoder_layer(x, params, *, num_heads, eps=1e-5):
    """One fused transformer encoder layer.  x: (B, N, D) float32."""
    B, N, D = x.shape
    g1, b1, Wqkv, Wproj, g2, b2, W1, W2 = params
    hidden = W1.shape[0]
    assert D % num_heads == 0

    # PyTorch nn.Linear stores weights as (out, in); the kernel computes x @ W^T,
    # so pre-transpose once on the host (tiny, done once per layer).
    wqkv_t = jnp.transpose(Wqkv).astype(jnp.float32)       # (D, 3D)
    wproj_t = jnp.transpose(Wproj).astype(jnp.float32)     # (D, D)
    w1_t = jnp.transpose(W1).astype(jnp.float32)           # (D, hidden)
    w2_t = jnp.transpose(W2).astype(jnp.float32)           # (hidden, D)
    g1_2 = g1.reshape(1, D).astype(jnp.float32)
    b1_2 = b1.reshape(1, D).astype(jnp.float32)
    g2_2 = g2.reshape(1, D).astype(jnp.float32)
    b2_2 = b2.reshape(1, D).astype(jnp.float32)

    const = lambda b: (0, 0)
    kernel = functools.partial(_encoder_layer_kernel, num_heads=num_heads, eps=eps)

    return pl.pallas_call(
        kernel,
        out_shape=jax.ShapeDtypeStruct((B, N, D), x.dtype),
        grid_spec=pltpu.PrefetchScalarGridSpec(
            num_scalar_prefetch=0,
            grid=(B,),
            in_specs=[
                pl.BlockSpec((None, N, D), lambda b: (b, 0, 0)),   # x (one batch row)
                pl.BlockSpec((1, D), const),                       # LN1 gamma
                pl.BlockSpec((1, D), const),                       # LN1 beta
                pl.BlockSpec((D, 3 * D), const),                   # Wqkv^T
                pl.BlockSpec((D, D), const),                       # Wproj^T
                pl.BlockSpec((1, D), const),                       # LN2 gamma
                pl.BlockSpec((1, D), const),                       # LN2 beta
                pl.BlockSpec((D, hidden), const),                  # W1^T
                pl.BlockSpec((hidden, D), const),                  # W2^T
            ],
            out_specs=pl.BlockSpec((None, N, D), lambda b: (b, 0, 0)),
        ),
        compiler_params=pltpu.CompilerParams(
            dimension_semantics=("parallel",),
            vmem_limit_bytes=32 * 1024 * 1024,
        ),
    )(x.astype(jnp.float32), g1_2, b1_2, wqkv_t, wproj_t, g2_2, b2_2, w1_t, w2_t)


def former_forward(x, layers_params, *, num_heads, eps=1e-5):
    """Former.forward: sequentially apply each EncoderLayer."""
    t = x
    for params in layers_params:
        t = encoder_layer(t, params, num_heads=num_heads, eps=eps)
    return t


# ----------------------------- pure-JAX reference -----------------------------
def _layer_ref(x, params, num_heads, eps=1e-5):
    g1, b1, Wqkv, Wproj, g2, b2, W1, W2 = params

    def ln(v, g, b):
        mu = jnp.mean(v, axis=-1, keepdims=True)
        var = jnp.mean((v - mu) ** 2, axis=-1, keepdims=True)
        return (v - mu) * jax.lax.rsqrt(var + eps) * g + b

    B, N, D = x.shape
    hd = D // num_heads
    h = ln(x, g1, b1)
    qkv = h @ Wqkv.T                                               # (B, N, 3D)
    qkv = qkv.reshape(B, N, 3, num_heads, hd).transpose(2, 0, 3, 1, 4)
    q, k, v = qkv[0], qkv[1], qkv[2]                               # (B, H, N, hd)
    attn = jnp.einsum('bhqd,bhkd->bhqk', q, k) * (hd ** -0.5)
    a = jax.nn.softmax(attn, axis=-1)
    o = jnp.einsum('bhqk,bhkd->bhqd', a, v)
    o = o.transpose(0, 2, 1, 3).reshape(B, N, D)
    x = x + o @ Wproj.T
    h2 = ln(x, g2, b2)
    z = jnp.maximum(h2 @ W1.T, 0.0)
    return x + z @ W2.T


def _former_ref(x, layers_params, num_heads, eps=1e-5):
    t = x
    for p in layers_params:
        t = _layer_ref(t, p, num_heads, eps)
    return t


if __name__ == "__main__":
    key = jax.random.PRNGKey(0)

    # Small shapes consistent with the module: Former(in_ch=32, num_tf=2, num_heads=2,
    # mlp_ratio=2.0, act='relu', bias=False) applied to a (batch=2, tokens=16, 32) tensor.
    B, N = 2, 16
    in_ch = 32
    num_heads = 2
    mlp_ratio = 2.0
    hidden = int(in_ch * mlp_ratio)
    num_tf = 2

    x_key, key = jax.random.split(key)
    x = jax.random.normal(x_key, (B, N, in_ch), dtype=jnp.float32)

    layers_params = []
    for _ in range(num_tf):
        k1, k2, k3, k4, key = jax.random.split(key, 5)
        g1 = jnp.ones((in_ch,), jnp.float32)      # LayerNorm default affine init
        b1 = jnp.zeros((in_ch,), jnp.float32)
        g2 = jnp.ones((in_ch,), jnp.float32)
        b2 = jnp.zeros((in_ch,), jnp.float32)
        Wqkv = jax.random.normal(k1, (3 * in_ch, in_ch), jnp.float32) * 0.1   # Linear(in, 3*hid)
        Wproj = jax.random.normal(k2, (in_ch, in_ch), jnp.float32) * 0.1      # Linear(hid, in)
        W1 = jax.random.normal(k3, (hidden, in_ch), jnp.float32) * 0.1        # fc1
        W2 = jax.random.normal(k4, (in_ch, hidden), jnp.float32) * 0.1        # fc2
        layers_params.append((g1, b1, Wqkv, Wproj, g2, b2, W1, W2))

    out = former_forward(x, layers_params, num_heads=num_heads)
    out = jax.block_until_ready(out)

    with jax.default_matmul_precision("float32"):
        ref = _former_ref(x, layers_params, num_heads)

    assert out.shape == (B, N, in_ch)
    assert jnp.allclose(out, ref, atol=1e-3, rtol=1e-3), "mismatch vs. reference"

    print("KERNEL_OK")
</pallas_src>

<mosaic_0001>
module attributes {stable_mosaic.version = 11 : i64} {
  func.func @_encoder_layer_kernel(%arg0: i32, %arg1: memref<1x16x32xf32, #tpu.memory_space<vmem>>, %arg2: memref<1x32xf32, #tpu.memory_space<vmem>>, %arg3: memref<1x32xf32, #tpu.memory_space<vmem>>, %arg4: memref<32x96xf32, #tpu.memory_space<vmem>>, %arg5: memref<32x32xf32, #tpu.memory_space<vmem>>, %arg6: memref<1x32xf32, #tpu.memory_space<vmem>>, %arg7: memref<1x32xf32, #tpu.memory_space<vmem>>, %arg8: memref<32x64xf32, #tpu.memory_space<vmem>>, %arg9: memref<64x32xf32, #tpu.memory_space<vmem>>, %arg10: memref<1x16x32xf32, #tpu.memory_space<vmem>>) attributes {dimension_semantics = [#tpu.dimension_semantics<parallel>], iteration_bounds = array<i64: 2>, scalar_prefetch = 0 : i64, scratch_operands = 0 : i64, tpu.core_type = #tpu.core_type<tc>, window_params = [{transform_indices = @transform_0, window_bounds = array<i64: 1, 16, 32>}, {pipeline_mode = #tpu.pipeline_mode<synchronous>, transform_indices = @transform_1, window_bounds = array<i64: 1, 32>}, {pipeline_mode = #tpu.pipeline_mode<synchronous>, transform_indices = @transform_2, window_bounds = array<i64: 1, 32>}, {pipeline_mode = #tpu.pipeline_mode<synchronous>, transform_indices = @transform_3, window_bounds = array<i64: 32, 96>}, {pipeline_mode = #tpu.pipeline_mode<synchronous>, transform_indices = @transform_4, window_bounds = array<i64: 32, 32>}, {pipeline_mode = #tpu.pipeline_mode<synchronous>, transform_indices = @transform_5, window_bounds = array<i64: 1, 32>}, {pipeline_mode = #tpu.pipeline_mode<synchronous>, transform_indices = @transform_6, window_bounds = array<i64: 1, 32>}, {pipeline_mode = #tpu.pipeline_mode<synchronous>, transform_indices = @transform_7, window_bounds = array<i64: 32, 64>}, {pipeline_mode = #tpu.pipeline_mode<synchronous>, transform_indices = @transform_8, window_bounds = array<i64: 64, 32>}, {transform_indices = @transform_9, window_bounds = array<i64: 1, 16, 32>}]} {
    %c0 = arith.constant 0 : index
    %c0_0 = arith.constant 0 : index
    %c0_1 = arith.constant 0 : index
    %0 = vector.load %arg1[%c0, %c0_0, %c0_1] : memref<1x16x32xf32, #tpu.memory_space<vmem>>, vector<1x16x32xf32>
    %1 = vector.shape_cast %0 : vector<1x16x32xf32> to vector<16x32xf32>
    %c0_2 = arith.constant 0 : index
    %c0_3 = arith.constant 0 : index
    %2 = vector.load %arg2[%c0_2, %c0_3] : memref<1x32xf32, #tpu.memory_space<vmem>>, vector<1x32xf32>
    %c0_4 = arith.constant 0 : index
    %c0_5 = arith.constant 0 : index
    %3 = vector.load %arg3[%c0_4, %c0_5] : memref<1x32xf32, #tpu.memory_space<vmem>>, vector<1x32xf32>
    %cst = arith.constant dense<0.000000e+00> : vector<16xf32>
    %4 = vector.multi_reduction <add>, %1, %cst [1] : vector<16x32xf32> to vector<16xf32>
    %5 = vector.shape_cast %4 : vector<16xf32> to vector<16x1xf32>
    %cst_6 = arith.constant 3.200000e+01 : f32
    %6 = vector.broadcast %cst_6 : f32 to vector<16x1xf32>
    %7 = arith.divf %5, %6 : vector<16x1xf32>
    %8 = vector.broadcast %7 : vector<16x1xf32> to vector<16x32xf32>
    %9 = arith.subf %1, %8 : vector<16x32xf32>
    %10 = arith.mulf %9, %9 : vector<16x32xf32>
    %cst_7 = arith.constant dense<0.000000e+00> : vector<16xf32>
    %11 = vector.multi_reduction <add>, %10, %cst_7 [1] : vector<16x32xf32> to vector<16xf32>
    %12 = vector.shape_cast %11 : vector<16xf32> to vector<16x1xf32>
    %cst_8 = arith.constant 3.200000e+01 : f32
    %13 = vector.broadcast %cst_8 : f32 to vector<16x1xf32>
    %14 = arith.divf %12, %13 : vector<16x1xf32>
    %cst_9 = arith.constant 9.99999974E-6 : f32
    %15 = vector.broadcast %cst_9 : f32 to vector<16x1xf32>
    %16 = arith.addf %14, %15 : vector<16x1xf32>
    %17 = math.rsqrt %16 : vector<16x1xf32>
    %18 = vector.broadcast %17 : vector<16x1xf32> to vector<16x32xf32>
    %19 = arith.mulf %9, %18 : vector<16x32xf32>
    %20 = vector.broadcast %2 : vector<1x32xf32> to vector<16x32xf32>
    %21 = arith.mulf %19, %20 : vector<16x32xf32>
    %22 = vector.broadcast %3 : vector<1x32xf32> to vector<16x32xf32>
    %23 = arith.addf %21, %22 : vector<16x32xf32>
    %c0_10 = arith.constant 0 : index
    %c0_11 = arith.constant 0 : index
    %24 = vector.load %arg4[%c0_10, %c0_11] : memref<32x96xf32, #tpu.memory_space<vmem>>, vector<32x96xf32>
    %cst_12 = arith.constant dense<0.000000e+00> : vector<16x96xf32>
    %25 = tpu.matmul %23, %24, %cst_12 {dimension_numbers = #tpu.dot_dimension_numbers<[1], [0], [0], [1], [0, 0, 1, 1], [], []>} : vector<16x32xf32>, vector<32x96xf32>, vector<16x96xf32> -> vector<16x96xf32>
    %cst_13 = arith.constant 0.000000e+00 : f32
    %26 = vector.broadcast %cst_13 : f32 to vector<16x32xf32>
    %27 = vector.extract_strided_slice %25 {offsets = [0, 0], sizes = [16, 16], strides = [1, 1]} : vector<16x96xf32> to vector<16x16xf32>
    %28 = vector.extract_strided_slice %25 {offsets = [0, 32], sizes = [16, 16], strides = [1, 1]} : vector<16x96xf32> to vector<16x16xf32>
    %29 = vector.extract_strided_slice %25 {offsets = [0, 64], sizes = [16, 16], strides = [1, 1]} : vector<16x96xf32> to vector<16x16xf32>
    %cst_14 = arith.constant dense<0.000000e+00> : vector<16x16xf32>
    %30 = tpu.matmul %27, %28, %cst_14 {dimension_numbers = #tpu.dot_dimension_numbers<[1], [1], [0], [0], [0, 0, 1, 0], [], []>} : vector<16x16xf32>, vector<16x16xf32>, vector<16x16xf32> -> vector<16x16xf32>
    %cst_15 = arith.constant 2.500000e-01 : f32
    %31 = vector.broadcast %cst_15 : f32 to vector<16x16xf32>
    %32 = arith.mulf %30, %31 : vector<16x16xf32>
    %cst_16 = arith.constant dense<0xFF800000> : vector<16xf32>
    %33 = vector.multi_reduction <maximumf>, %32, %cst_16 [1] : vector<16x16xf32> to vector<16xf32>
    %34 = vector.shape_cast %33 : vector<16xf32> to vector<16x1xf32>
    %35 = vector.broadcast %34 : vector<16x1xf32> to vector<16x16xf32>
    %36 = arith.subf %32, %35 : vector<16x16xf32>
    %37 = math.exp %36 : vector<16x16xf32>
    %cst_17 = arith.constant dense<0.000000e+00> : vector<16xf32>
    %38 = vector.multi_reduction <add>, %37, %cst_17 [1] : vector<16x16xf32> to vector<16xf32>
    %39 = vector.shape_cast %38 : vector<16xf32> to vector<16x1xf32>
    %40 = vector.broadcast %39 : vector<16x1xf32> to vector<16x16xf32>
    %41 = arith.divf %37, %40 : vector<16x16xf32>
    %cst_18 = arith.constant dense<0.000000e+00> : vector<16x16xf32>
    %42 = tpu.matmul %41, %29, %cst_18 {dimension_numbers = #tpu.dot_dimension_numbers<[1], [0], [0], [1], [0, 0, 1, 1], [], []>} : vector<16x16xf32>, vector<16x16xf32>, vector<16x16xf32> -> vector<16x16xf32>
    %c0_19 = arith.constant 0 : index
    %c0_20 = arith.constant 0 : index
    %43 = vector.load %arg5[%c0_19, %c0_20] : memref<32x32xf32, #tpu.memory_space<vmem>>, vector<16x32xf32>
    %cst_21 = arith.constant dense<0.000000e+00> : vector<16x32xf32>
    %44 = tpu.matmul %42, %43, %cst_21 {dimension_numbers = #tpu.dot_dimension_numbers<[1], [0], [0], [1], [0, 0, 1, 1], [], []>} : vector<16x16xf32>, vector<16x32xf32>, vector<16x32xf32> -> vector<16x32xf32>
    %45 = arith.addf %26, %44 : vector<16x32xf32>
    %46 = vector.extract_strided_slice %25 {offsets = [0, 16], sizes = [16, 16], strides = [1, 1]} : vector<16x96xf32> to vector<16x16xf32>
    %47 = vector.extract_strided_slice %25 {offsets = [0, 48], sizes = [16, 16], strides = [1, 1]} : vector<16x96xf32> to vector<16x16xf32>
    %48 = vector.extract_strided_slice %25 {offsets = [0, 80], sizes = [16, 16], strides = [1, 1]} : vector<16x96xf32> to vector<16x16xf32>
    %cst_22 = arith.constant dense<0.000000e+00> : vector<16x16xf32>
    %49 = tpu.matmul %46, %47, %cst_22 {dimension_numbers = #tpu.dot_dimension_numbers<[1], [1], [0], [0], [0, 0, 1, 0], [], []>} : vector<16x16xf32>, vector<16x16xf32>, vector<16x16xf32> -> vector<16x16xf32>
    %cst_23 = arith.constant 2.500000e-01 : f32
    %50 = vector.broadcast %cst_23 : f32 to vector<16x16xf32>
    %51 = arith.mulf %49, %50 : vector<16x16xf32>
    %cst_24 = arith.constant dense<0xFF800000> : vector<16xf32>
    %52 = vector.multi_reduction <maximumf>, %51, %cst_24 [1] : vector<16x16xf32> to vector<16xf32>
    %53 = vector.shape_cast %52 : vector<16xf32> to vector<16x1xf32>
    %54 = vector.broadcast %53 : vector<16x1xf32> to vector<16x16xf32>
    %55 = arith.subf %51, %54 : vector<16x16xf32>
    %56 = math.exp %55 : vector<16x16xf32>
    %cst_25 = arith.constant dense<0.000000e+00> : vector<16xf32>
    %57 = vector.multi_reduction <add>, %56, %cst_25 [1] : vector<16x16xf32> to vector<16xf32>
    %58 = vector.shape_cast %57 : vector<16xf32> to vector<16x1xf32>
    %59 = vector.broadcast %58 : vector<16x1xf32> to vector<16x16xf32>
    %60 = arith.divf %56, %59 : vector<16x16xf32>
    %cst_26 = arith.constant dense<0.000000e+00> : vector<16x16xf32>
    %61 = tpu.matmul %60, %48, %cst_26 {dimension_numbers = #tpu.dot_dimension_numbers<[1], [0], [0], [1], [0, 0, 1, 1], [], []>} : vector<16x16xf32>, vector<16x16xf32>, vector<16x16xf32> -> vector<16x16xf32>
    %c16 = arith.constant 16 : index
    %c0_27 = arith.constant 0 : index
    %62 = vector.load %arg5[%c16, %c0_27] : memref<32x32xf32, #tpu.memory_space<vmem>>, vector<16x32xf32>
    %cst_28 = arith.constant dense<0.000000e+00> : vector<16x32xf32>
    %63 = tpu.matmul %61, %62, %cst_28 {dimension_numbers = #tpu.dot_dimension_numbers<[1], [0], [0], [1], [0, 0, 1, 1], [], []>} : vector<16x16xf32>, vector<16x32xf32>, vector<16x32xf32> -> vector<16x32xf32>
    %64 = arith.addf %45, %63 : vector<16x32xf32>
    %65 = arith.addf %1, %64 : vector<16x32xf32>
    %c0_29 = arith.constant 0 : index
    %c0_30 = arith.constant 0 : index
    %66 = vector.load %arg6[%c0_29, %c0_30] : memref<1x32xf32, #tpu.memory_space<vmem>>, vector<1x32xf32>
    %c0_31 = arith.constant 0 : index
    %c0_32 = arith.constant 0 : index
    %67 = vector.load %arg7[%c0_31, %c0_32] : memref<1x32xf32, #tpu.memory_space<vmem>>, vector<1x32xf32>
    %cst_33 = arith.constant dense<0.000000e+00> : vector<16xf32>
    %68 = vector.multi_reduction <add>, %65, %cst_33 [1] : vector<16x32xf32> to vector<16xf32>
    %69 = vector.shape_cast %68 : vector<16xf32> to vector<16x1xf32>
    %cst_34 = arith.constant 3.200000e+01 : f32
    %70 = vector.broadcast %cst_34 : f32 to vector<16x1xf32>
    %71 = arith.divf %69, %70 : vector<16x1xf32>
    %72 = vector.broadcast %71 : vector<16x1xf32> to vector<16x32xf32>
    %73 = arith.subf %65, %72 : vector<16x32xf32>
    %74 = arith.mulf %73, %73 : vector<16x32xf32>
    %cst_35 = arith.constant dense<0.000000e+00> : vector<16xf32>
    %75 = vector.multi_reduction <add>, %74, %cst_35 [1] : vector<16x32xf32> to vector<16xf32>
    %76 = vector.shape_cast %75 : vector<16xf32> to vector<16x1xf32>
    %cst_36 = arith.constant 3.200000e+01 : f32
    %77 = vector.broadcast %cst_36 : f32 to vector<16x1xf32>
    %78 = arith.divf %76, %77 : vector<16x1xf32>
    %cst_37 = arith.constant 9.99999974E-6 : f32
    %79 = vector.broadcast %cst_37 : f32 to vector<16x1xf32>
    %80 = arith.addf %78, %79 : vector<16x1xf32>
    %81 = math.rsqrt %80 : vector<16x1xf32>
    %82 = vector.broadcast %81 : vector<16x1xf32> to vector<16x32xf32>
    %83 = arith.mulf %73, %82 : vector<16x32xf32>
    %84 = vector.broadcast %66 : vector<1x32xf32> to vector<16x32xf32>
    %85 = arith.mulf %83, %84 : vector<16x32xf32>
    %86 = vector.broadcast %67 : vector<1x32xf32> to vector<16x32xf32>
    %87 = arith.addf %85, %86 : vector<16x32xf32>
    %c0_38 = arith.constant 0 : index
    %c0_39 = arith.constant 0 : index
    %88 = vector.load %arg8[%c0_38, %c0_39] : memref<32x64xf32, #tpu.memory_space<vmem>>, vector<32x64xf32>
    %cst_40 = arith.constant dense<0.000000e+00> : vector<16x64xf32>
    %89 = tpu.matmul %87, %88, %cst_40 {dimension_numbers = #tpu.dot_dimension_numbers<[1], [0], [0], [1], [0, 0, 1, 1], [], []>} : vector<16x32xf32>, vector<32x64xf32>, vector<16x64xf32> -> vector<16x64xf32>
    %cst_41 = arith.constant 0.000000e+00 : f32
    %90 = vector.broadcast %cst_41 : f32 to vector<16x64xf32>
    %91 = arith.maximumf %89, %90 : vector<16x64xf32>
    %c0_42 = arith.constant 0 : index
    %c0_43 = arith.constant 0 : index
    %92 = vector.load %arg9[%c0_42, %c0_43] : memref<64x32xf32, #tpu.memory_space<vmem>>, vector<64x32xf32>
    %cst_44 = arith.constant dense<0.000000e+00> : vector<16x32xf32>
    %93 = tpu.matmul %91, %92, %cst_44 {dimension_numbers = #tpu.dot_dimension_numbers<[1], [0], [0], [1], [0, 0, 1, 1], [], []>} : vector<16x64xf32>, vector<64x32xf32>, vector<16x32xf32> -> vector<16x32xf32>
    %94 = arith.addf %65, %93 : vector<16x32xf32>
    %c0_45 = arith.constant 0 : index
    %c0_46 = arith.constant 0 : index
    %c0_47 = arith.constant 0 : index
    %95 = vector.load %arg10[%c0_45, %c0_46, %c0_47] : memref<1x16x32xf32, #tpu.memory_space<vmem>>, vector<1x16x32xf32>
    %96 = vector.shape_cast %95 : vector<1x16x32xf32> to vector<16x32xf32>
    %97 = vector.shape_cast %94 : vector<16x32xf32> to vector<1x16x32xf32>
    tpu.vector_store %arg10[%c0_45, %c0_46, %c0_47], %97 {strides = array<i32>} : memref<1x16x32xf32, #tpu.memory_space<vmem>>, vector<1x16x32xf32>,
    return
  }
  func.func @transform_0(%arg0: i32) -> (i32, i32, i32) {
    %c0_i32 = arith.constant 0 : i32
    %c0_i32_0 = arith.constant 0 : i32
    %c0_i32_1 = arith.constant 0 : i32
    return %arg0, %c0_i32, %c0_i32_0 : i32, i32, i32
  }
  func.func @transform_1(%arg0: i32) -> (i32, i32) {
    %c0_i32 = arith.constant 0 : i32
    %c0_i32_0 = arith.constant 0 : i32
    %c0_i32_1 = arith.constant 0 : i32
    return %c0_i32, %c0_i32_0 : i32, i32
  }
  func.func @transform_2(%arg0: i32) -> (i32, i32) {
    %c0_i32 = arith.constant 0 : i32
    %c0_i32_0 = arith.constant 0 : i32
    %c0_i32_1 = arith.constant 0 : i32
    return %c0_i32, %c0_i32_0 : i32, i32
  }
  func.func @transform_3(%arg0: i32) -> (i32, i32) {
    %c0_i32 = arith.constant 0 : i32
    %c0_i32_0 = arith.constant 0 : i32
    %c0_i32_1 = arith.constant 0 : i32
    return %c0_i32, %c0_i32_0 : i32, i32
  }
  func.func @transform_4(%arg0: i32) -> (i32, i32) {
    %c0_i32 = arith.constant 0 : i32
    %c0_i32_0 = arith.constant 0 : i32
    %c0_i32_1 = arith.constant 0 : i32
    return %c0_i32, %c0_i32_0 : i32, i32
  }
  func.func @transform_5(%arg0: i32) -> (i32, i32) {
    %c0_i32 = arith.constant 0 : i32
    %c0_i32_0 = arith.constant 0 : i32
    %c0_i32_1 = arith.constant 0 : i32
    return %c0_i32, %c0_i32_0 : i32, i32
  }
  func.func @transform_6(%arg0: i32) -> (i32, i32) {
    %c0_i32 = arith.constant 0 : i32
    %c0_i32_0 = arith.constant 0 : i32
    %c0_i32_1 = arith.constant 0 : i32
    return %c0_i32, %c0_i32_0 : i32, i32
  }
  func.func @transform_7(%arg0: i32) -> (i32, i32) {
    %c0_i32 = arith.constant 0 : i32
    %c0_i32_0 = arith.constant 0 : i32
    %c0_i32_1 = arith.constant 0 : i32
    return %c0_i32, %c0_i32_0 : i32, i32
  }
  func.func @transform_8(%arg0: i32) -> (i32, i32) {
    %c0_i32 = arith.constant 0 : i32
    %c0_i32_0 = arith.constant 0 : i32
    %c0_i32_1 = arith.constant 0 : i32
    return %c0_i32, %c0_i32_0 : i32, i32
  }
  func.func @transform_9(%arg0: i32) -> (i32, i32, i32) {
    %c0_i32 = arith.constant 0 : i32
    %c0_i32_0 = arith.constant 0 : i32
    %c0_i32_1 = arith.constant 0 : i32
    return %arg0, %c0_i32, %c0_i32_0 : i32, i32, i32
  }
}

</mosaic_0001>

<llo_original>
// kernel: tpu_custom_call.1
$region0: #{tpu_custom_call.1}
  #allocation0 [shape = 'u32[]', space=smem, size = 0x4, offset = 0x4, fixed_abs, tag = 'smem constant byte address 0x4 - core index']
  #allocation1 [shape = 'u32[72,128]{1,0:T(1,128)}', space=vmem, size = 0x9000, scoped, tag = 'internal scratch']
  %s0 = inlined_call_operand.vmem [shape: f32[2,16,32], index: 0, kind: input, shape index: {}]
  %s1 = inlined_call_operand.hbm [shape: f32[1,32], index: 1, kind: input, shape index: {}]
  %s2 = inlined_call_operand.vmem [shape: f32[1,32], index: 2, kind: input, shape index: {}]
  %s3 = inlined_call_operand.vmem [shape: f32[32,96], index: 3, kind: input, shape index: {}]
  %s4 = inlined_call_operand.vmem [shape: f32[32,32], index: 4, kind: input, shape index: {}]
  %s5 = inlined_call_operand.vmem [shape: f32[1,32], index: 5, kind: input, shape index: {}]
  %s6 = inlined_call_operand.vmem [shape: f32[1,32], index: 6, kind: input, shape index: {}]
  %s7 = inlined_call_operand.hbm [shape: f32[32,64], index: 7, kind: input, shape index: {}]
  %s8 = inlined_call_operand.vmem [shape: f32[64,32], index: 8, kind: input, shape index: {}]
  %s9 = inlined_call_operand.hbm [shape: f32[2,16,32], index: 9, kind: output, shape index: {}]
  %s10 = sld [smem:[#allocation0]]
  $region77: #{tpu_custom_call.1} parent=0
    _
  %s12 = ssub.s32 1, %s10
  %s13 = scalar_select 0, %s12, %s10
  $region1: #{tpu_custom_call.1} parent=0
    #allocation2 [shape = 'u8[512]{0}', space=vmem, size = 0x400, scoped, tag = 'input window, operand 1, single buffered']
    #allocation3 [shape = 's32[2]{0}', space=sflag, size = 0x8, scoped, tag = 'scoped memory for tpu_custom_call.1']
    #allocation4 [shape = 's32[2]{0}', space=sflag, size = 0x8, scoped, tag = 'scoped memory for tpu_custom_call.1']
    #allocation5 [shape = 'u8[16384]{0}', space=vmem, size = 0x4000, scoped, tag = 'input window, operand 7, single buffered']
    #allocation6 [shape = 's32[1]{0}', space=sflag, size = 0x4, scoped, tag = 'scoped memory for tpu_custom_call.1']
    #allocation7 [shape = 'u8[16384]{0}', space=vmem, size = 0x4000, scoped, tag = 'output window, operand 0']
    %14 = vsyncpa [#allocation3], 0
    %15 = vsyncpa [#allocation6], 0
    %16 = vsyncpa [#allocation4], 0
    %s17 = scalar_lea.sflag [#allocation4], 1
    %18 = vsyncpa %s17, 0
    loop: start=0, step=1, limit=4
    $region2: #{tpu_custom_call.1} parent=1 // loop_pre_header
      _
    $region3: #{tpu_custom_call.1} parent=1 // loop_header
      %s20 = sphi 0, %s24
      %p21 = scmp.ge.s32.totalorder %s20, 4
      %s30 = sphi 0, %s32
      %s33 = sphi 0, %s30
      %s34 = sphi 0, %s33
      %s50 = sphi 0, %s34
      %s54 = sphi 0, %s54
      %s56 = sphi 0, %s54
      %s57 = sphi 0, %s56
      %s71 = sphi 0, %s57
      %s75 = sphi 0, %s75
      %s77 = sphi 0, %s75
      %s78 = sphi 0, %s77
      %s92 = sphi 0, %s78
      %s96 = sphi 0, %s96
      %s98 = sphi 0, %s96
      %s99 = sphi 0, %s98
      %s113 = sphi 0, %s99
      %s117 = sphi 0, %s117
      %s119 = sphi 0, %s117
      %s120 = sphi 0, %s119
      %s134 = sphi 0, %s120
      %s138 = sphi 0, %s138
      %s140 = sphi 0, %s138
      %s141 = sphi 0, %s140
      %s155 = sphi 0, %s141
      %s159 = sphi 0, %s159
      %s161 = sphi 0, %s159
      %s162 = sphi 0, %s161
      %s176 = sphi 0, %s162
      %s180 = sphi 0, %s180
      %s182 = sphi 0, %s180
      %s183 = sphi 0, %s182
      %s197 = sphi 0, %s183
      %s201 = sphi 0, %s201
      %s203 = sphi 0, %s201
      %s204 = sphi 0, %s203
      %s218 = sphi 0, %s204
      %s224 = sphi 0, %s226
      %s227 = sphi 0, %s224
      %s228 = sphi 0, %s227
      %s244 = sphi 0, %s228
    $region4: #{tpu_custom_call.1} parent=1 // loop_header_branch
      %23 = sbr.rel (%p21) target = $region8
    $region5: #{tpu_custom_call.1} parent=1 // loop_body
      %s25 = ssub.s32 %s20, 1
      %s26 = ssub.s32 %s20, 2
      %s27 = sadd.s32 %s20, 1
      %s28 = ssub.s32 %s20, %s27
      %p29 = scmp.eq.s32.totalorder %s28, 0
      %s31 = sadd.s32 %s30, 1
      %s32 = scalar_select %p29, %s30, %s31
      %p35 = pneg %p29
      %p36 = scmp.eq.s32.totalorder %s20, 1
      %p37 = por %p35, %p36
      %p38 = scmp.ne.s32.totalorder %s30, %s33
      %p39 = scmp.eq.s32.totalorder %s20, 0
      %p40 = por %p38, %p39
      %p41 = scmp.ne.s32.totalorder %s30, %s33
      %p42 = scmp.eq.s32.totalorder %s25, 1
      %p43 = por %p41, %p42
      %p44 = scmp.ne.s32.totalorder %s33, %s34
      %p45 = scmp.eq.s32.totalorder %s25, 0
      %p46 = por %p44, %p45
      %p47 = scmp.ne.s32.totalorder %s33, %s34
      %p48 = scmp.eq.s32.totalorder %s26, 1
      %p49 = por %p47, %p48
      %p51 = scmp.ne.s32.totalorder %s34, %s50
      %p52 = scmp.eq.s32.totalorder %s26, 0
      %p53 = por %p51, %p52
      %s55 = sadd.s32 %s54, 1
      %p58 = scmp.eq.s32.totalorder %s20, 1
      %p59 = scmp.ne.s32.totalorder %s54, %s56
      %p60 = scmp.eq.s32.totalorder %s20, 0
      %p61 = por %p59, %p60
      %p62 = scmp.ne.s32.totalorder %s54, %s56
      %p63 = scmp.eq.s32.totalorder %s25, 1
      %p64 = por %p62, %p63
      %p65 = scmp.ne.s32.totalorder %s56, %s57
      %p66 = scmp.eq.s32.totalorder %s25, 0
      %p67 = por %p65, %p66
      %p68 = scmp.ne.s32.totalorder %s56, %s57
      %p69 = scmp.eq.s32.totalorder %s26, 1
      %p70 = por %p68, %p69
      %p72 = scmp.ne.s32.totalorder %s57, %s71
      %p73 = scmp.eq.s32.totalorder %s26, 0
      %p74 = por %p72, %p73
      %s76 = sadd.s32 %s75, 1
      %p79 = scmp.eq.s32.totalorder %s20, 1
      %p80 = scmp.ne.s32.totalorder %s75, %s77
      %p81 = scmp.eq.s32.totalorder %s20, 0
      %p82 = por %p80, %p81
      %p83 = scmp.ne.s32.totalorder %s75, %s77
      %p84 = scmp.eq.s32.totalorder %s25, 1
      %p85 = por %p83, %p84
      %p86 = scmp.ne.s32.totalorder %s77, %s78
      %p87 = scmp.eq.s32.totalorder %s25, 0
      %p88 = por %p86, %p87
      %p89 = scmp.ne.s32.totalorder %s77, %s78
      %p90 = scmp.eq.s32.totalorder %s26, 1
      %p91 = por %p89, %p90
      %p93 = scmp.ne.s32.totalorder %s78, %s92
      %p94 = scmp.eq.s32.totalorder %s26, 0
      %p95 = por %p93, %p94
      %s97 = sadd.s32 %s96, 1
      %p100 = scmp.eq.s32.totalorder %s20, 1
      %p101 = scmp.ne.s32.totalorder %s96, %s98
      %p102 = scmp.eq.s32.totalorder %s20, 0
      %p103 = por %p101, %p102
      %p104 = scmp.ne.s32.totalorder %s96, %s98
      %p105 = scmp.eq.s32.totalorder %s25, 1
      %p106 = por %p104, %p105
      %p107 = scmp.ne.s32.totalorder %s98, %s99
      %p108 = scmp.eq.s32.totalorder %s25, 0
      %p109 = por %p107, %p108
      %p110 = scmp.ne.s32.totalorder %s98, %s99
      %p111 = scmp.eq.s32.totalorder %s26, 1
      %p112 = por %p110, %p111
      %p114 = scmp.ne.s32.totalorder %s99, %s113
      %p115 = scmp.eq.s32.totalorder %s26, 0
      %p116 = por %p114, %p115
      %s118 = sadd.s32 %s117, 1
      %p121 = scmp.eq.s32.totalorder %s20, 1
      %p122 = scmp.ne.s32.totalorder %s117, %s119
      %p123 = scmp.eq.s32.totalorder %s20, 0
      %p124 = por %p122, %p123
      %p125 = scmp.ne.s32.totalorder %s117, %s119
      %p126 = scmp.eq.s32.totalorder %s25, 1
      %p127 = por %p125, %p126
      %p128 = scmp.ne.s32.totalorder %s119, %s120
      %p129 = scmp.eq.s32.totalorder %s25, 0
      %p130 = por %p128, %p129
      %p131 = scmp.ne.s32.totalorder %s119, %s120
      %p132 = scmp.eq.s32.totalorder %s26, 1
      %p133 = por %p131, %p132
      %p135 = scmp.ne.s32.totalorder %s120, %s134
      %p136 = scmp.eq.s32.totalorder %s26, 0
      %p137 = por %p135, %p136
      %s139 = sadd.s32 %s138, 1
      %p142 = scmp.eq.s32.totalorder %s20, 1
      %p143 = scmp.ne.s32.totalorder %s138, %s140
      %p144 = scmp.eq.s32.totalorder %s20, 0
      %p145 = por %p143, %p144
      %p146 = scmp.ne.s32.totalorder %s138, %s140
      %p147 = scmp.eq.s32.totalorder %s25, 1
      %p148 = por %p146, %p147
      %p149 = scmp.ne.s32.totalorder %s140, %s141
      %p150 = scmp.eq.s32.totalorder %s25, 0
      %p151 = por %p149, %p150
      %p152 = scmp.ne.s32.totalorder %s140, %s141
      %p153 = scmp.eq.s32.totalorder %s26, 1
      %p154 = por %p152, %p153
      %p156 = scmp.ne.s32.totalorder %s141, %s155
      %p157 = scmp.eq.s32.totalorder %s26, 0
      %p158 = por %p156, %p157
      %s160 = sadd.s32 %s159, 1
      %p163 = scmp.eq.s32.totalorder %s20, 1
      %p164 = scmp.ne.s32.totalorder %s159, %s161
      %p165 = scmp.eq.s32.totalorder %s20, 0
      %p166 = por %p164, %p165
      %p167 = scmp.ne.s32.totalorder %s159, %s161
      %p168 = scmp.eq.s32.totalorder %s25, 1
      %p169 = por %p167, %p168
      %p170 = scmp.ne.s32.totalorder %s161, %s162
      %p171 = scmp.eq.s32.totalorder %s25, 0
      %p172 = por %p170, %p171
      %p173 = scmp.ne.s32.totalorder %s161, %s162
      %p174 = scmp.eq.s32.totalorder %s26, 1
      %p175 = por %p173, %p174
      %p177 = scmp.ne.s32.totalorder %s162, %s176
      %p178 = scmp.eq.s32.totalorder %s26, 0
      %p179 = por %p177, %p178
      %s181 = sadd.s32 %s180, 1
      %p184 = scmp.eq.s32.totalorder %s20, 1
      %p185 = scmp.ne.s32.totalorder %s180, %s182
      %p186 = scmp.eq.s32.totalorder %s20, 0
      %p187 = por %p185, %p186
      %p188 = scmp.ne.s32.totalorder %s180, %s182
      %p189 = scmp.eq.s32.totalorder %s25, 1
      %p190 = por %p188, %p189
      %p191 = scmp.ne.s32.totalorder %s182, %s183
      %p192 = scmp.eq.s32.totalorder %s25, 0
      %p193 = por %p191, %p192
      %p194 = scmp.ne.s32.totalorder %s182, %s183
      %p195 = scmp.eq.s32.totalorder %s26, 1
      %p196 = por %p194, %p195
      %p198 = scmp.ne.s32.totalorder %s183, %s197
      %p199 = scmp.eq.s32.totalorder %s26, 0
      %p200 = por %p198, %p199
      %s202 = sadd.s32 %s201, 1
      %p205 = scmp.eq.s32.totalorder %s20, 1
      %p206 = scmp.ne.s32.totalorder %s201, %s203
      %p207 = scmp.eq.s32.totalorder %s20, 0
      %p208 = por %p206, %p207
      %p209 = scmp.ne.s32.totalorder %s201, %s203
      %p210 = scmp.eq.s32.totalorder %s25, 1
      %p211 = por %p209, %p210
      %p212 = scmp.ne.s32.totalorder %s203, %s204
      %p213 = scmp.eq.s32.totalorder %s25, 0
      %p214 = por %p212, %p213
      %p215 = scmp.ne.s32.totalorder %s203, %s204
      %p216 = scmp.eq.s32.totalorder %s26, 1
      %p217 = por %p215, %p216
      %p219 = scmp.ne.s32.totalorder %s204, %s218
      %p220 = scmp.eq.s32.totalorder %s26, 0
      %p221 = por %p219, %p220
      %s222 = ssub.s32 %s20, %s27
      %p223 = scmp.eq.s32.totalorder %s222, 0
      %s225 = sadd.s32 %s224, 1
      %s226 = scalar_select %p223, %s224, %s225
      %p229 = pneg %p223
      %p230 = scmp.eq.s32.totalorder %s20, 1
      %p231 = por %p229, %p230
      %p232 = scmp.ne.s32.totalorder %s224, %s227
      %p233 = scmp.eq.s32.totalorder %s20, 0
      %p234 = por %p232, %p233
      %p235 = scmp.ne.s32.totalorder %s224, %s227
      %p236 = scmp.eq.s32.totalorder %s25, 1
      %p237 = por %p235, %p236
      %p238 = scmp.ne.s32.totalorder %s227, %s228
      %p239 = scmp.eq.s32.totalorder %s25, 0
      %p240 = por %p238, %p239
      %p241 = scmp.ne.s32.totalorder %s227, %s228
      %p242 = scmp.eq.s32.totalorder %s26, 1
      %p243 = por %p241, %p242
      %p245 = scmp.ne.s32.totalorder %s228, %s244
      %p246 = scmp.eq.s32.totalorder %s26, 0
      %p247 = por %p245, %p246
      %p248 = scmp.le.s32.totalorder 1, %s20
      %p249 = scmp.lt.s32.totalorder %s20, 3
      %p250 = pnand %p248, %p249
      %p251 = pneg %p250
      // Predicated region
      $region9: #{tpu_custom_call.1} parent=5 // pred_check
        _
      $region10: #{tpu_custom_call.1} parent=5 // pred_check_branch
        %253 = sbr.rel (%p250) target = $region12
      $region11: #{tpu_custom_call.1} parent=5 // pred_region
        %s254 = ssub.s32 %s20, 1
        // Predicated region
        $region13: #{tpu_custom_call.1} parent=11 // pred_check
          %p255 = pneg %p67
        $region14: #{tpu_custom_call.1} parent=11 // pred_check_branch
          %257 = sbr.rel (%p255) target = $region16
        $region15: #{tpu_custom_call.1} parent=11 // pred_region
          %259 = vsyncadd [#allocation3], 0
          %s261 = sshll.u32 %s1, 4
          %s262 = int_to_ptr.hbm [resolvable:$true] %s261
          %s263 = sshll.u32 [#allocation2], 4
          %s264 = int_to_ptr.vmem [resolvable:$true] %s263
          %266 = dma.hbm_to_vmem [thread:$0]  %s262, 16, %s264, [#allocation3]
        $region16: #{tpu_custom_call.1} parent=11 // pred_fallthru
          _
        // Predicated region
        $region17: #{tpu_custom_call.1} parent=11 // pred_check
          %p267 = pneg %p88
        $region18: #{tpu_custom_call.1} parent=11 // pred_check_branch
          %269 = sbr.rel (%p267) target = $region20
        $region19: #{tpu_custom_call.1} parent=11 // pred_region
          _
        $region20: #{tpu_custom_call.1} parent=11 // pred_fallthru
          _
        // Predicated region
        $region21: #{tpu_custom_call.1} parent=11 // pred_check
          %p270 = pneg %p109
        $region22: #{tpu_custom_call.1} parent=11 // pred_check_branch
          %272 = sbr.rel (%p270) target = $region24
        $region23: #{tpu_custom_call.1} parent=11 // pred_region
          _
        $region24: #{tpu_custom_call.1} parent=11 // pred_fallthru
          _
        // Predicated region
        $region25: #{tpu_custom_call.1} parent=11 // pred_check
          %p273 = pneg %p130
        $region26: #{tpu_custom_call.1} parent=11 // pred_check_branch
          %275 = sbr.rel (%p273) target = $region28
        $region27: #{tpu_custom_call.1} parent=11 // pred_region
          _
        $region28: #{tpu_custom_call.1} parent=11 // pred_fallthru
          _
        // Predicated region
        $region29: #{tpu_custom_call.1} parent=11 // pred_check
          %p276 = pneg %p151
        $region30: #{tpu_custom_call.1} parent=11 // pred_check_branch
          %278 = sbr.rel (%p276) target = $region32
        $region31: #{tpu_custom_call.1} parent=11 // pred_region
          _
        $region32: #{tpu_custom_call.1} parent=11 // pred_fallthru
          _
        // Predicated region
        $region33: #{tpu_custom_call.1} parent=11 // pred_check
          %p279 = pneg %p172
        $region34: #{tpu_custom_call.1} parent=11 // pred_check_branch
          %281 = sbr.rel (%p279) target = $region36
        $region35: #{tpu_custom_call.1} parent=11 // pred_region
          _
        $region36: #{tpu_custom_call.1} parent=11 // pred_fallthru
          _
        // Predicated region
        $region37: #{tpu_custom_call.1} parent=11 // pred_check
          %p282 = pneg %p193
        $region38: #{tpu_custom_call.1} parent=11 // pred_check_branch
          %284 = sbr.rel (%p282) target = $region40
        $region39: #{tpu_custom_call.1} parent=11 // pred_region
          %286 = vsyncadd [#allocation6], 0
          %s287 = sshll.u32 %s7, 4
          %s288 = int_to_ptr.hbm [resolvable:$true] %s287
          %s289 = sshll.u32 [#allocation5], 4
          %s290 = int_to_ptr.vmem [resolvable:$true] %s289
          %295 = dma.hbm_to_vmem [thread:$0]  %s288, 512, %s290, [#allocation6], 128, 128, 8
        $region40: #{tpu_custom_call.1} parent=11 // pred_fallthru
          _
        // Predicated region
        $region41: #{tpu_custom_call.1} parent=11 // pred_check
          %p296 = pneg %p214
        $region42: #{tpu_custom_call.1} parent=11 // pred_check_branch
          %298 = sbr.rel (%p296) target = $region44
        $region43: #{tpu_custom_call.1} parent=11 // pred_region
          _
        $region44: #{tpu_custom_call.1} parent=11 // pred_fallthru
          _
      $region12: #{tpu_custom_call.1} parent=5 // pred_fallthru
        _
      %p299 = scmp.lt.s32.totalorder %s20, 2
      // Predicated region
      $region45: #{tpu_custom_call.1} parent=5 // pred_check
        %p300 = pneg %p299
      $region46: #{tpu_custom_call.1} parent=5 // pred_check_branch
        %302 = sbr.rel (%p300) target = $region48
      $region47: #{tpu_custom_call.1} parent=5 // pred_region
        // Predicated region
        $region49: #{tpu_custom_call.1} parent=47 // pred_check
          %p303 = pneg %p40
        $region50: #{tpu_custom_call.1} parent=47 // pred_check_branch
          %305 = sbr.rel (%p303) target = $region52
        $region51: #{tpu_custom_call.1} parent=47 // pred_region
          %p306 = scmp.lt.s32.totalorder %s20, 1
          %s307 = scalar_select %p306, %s20, 1
          %s308 = smul.addr %s307, 2
          %s309 = smul.addr %s308, 8
          %s310 = scalar_lea.vmem %s0, %s309
        $region52: #{tpu_custom_call.1} parent=47 // pred_fallthru
          _
      $region48: #{tpu_custom_call.1} parent=5 // pred_fallthru
        _
      %p311 = scmp.le.s32.totalorder 1, %s20
      %p312 = scmp.lt.s32.totalorder %s20, 3
      %p313 = pnand %p311, %p312
      %p314 = pneg %p313
      // Predicated region
      $region53: #{tpu_custom_call.1} parent=5 // pred_check
        _
      $region54: #{tpu_custom_call.1} parent=5 // pred_check_branch
        %316 = sbr.rel (%p313) target = $region56
      $region55: #{tpu_custom_call.1} parent=5 // pred_region
        %s317 = ssub.s32 %s20, 1
        // Predicated region
        $region57: #{tpu_custom_call.1} parent=55 // pred_check
          %p318 = pneg %p67
        $region58: #{tpu_custom_call.1} parent=55 // pred_check_branch
          %320 = sbr.rel (%p318) target = $region60
        $region59: #{tpu_custom_call.1} parent=55 // pred_region
          %322 = dma.done [#allocation3], 16
        $region60: #{tpu_custom_call.1} parent=55 // pred_fallthru
          _
        // Predicated region
        $region61: #{tpu_custom_call.1} parent=55 // pred_check
          %p323 = pneg %p193
        $region62: #{tpu_custom_call.1} parent=55 // pred_check_branch
          %325 = sbr.rel (%p323) target = $region64
        $region63: #{tpu_custom_call.1} parent=55 // pred_region
          %327 = dma.done [#allocation6], 512
        $region64: #{tpu_custom_call.1} parent=55 // pred_fallthru
          _
        %p328 = scmp.lt.s32.totalorder %s25, 1
        %s329 = scalar_select %p328, %s25, 1
        %s330 = smul.addr %s329, 2
        %s331 = smul.addr %s330, 8
        %s332 = scalar_lea.vmem %s0, %s331
        %p333 = pneg %p46
        %p334 = pneg %p43
        %p335 = pneg %p67
        %p336 = pneg %p64
        %p337 = pneg %p88
        %p338 = pneg %p85
        %p339 = pneg %p109
        %p340 = pneg %p106
        %p341 = pneg %p130
        %p342 = pneg %p127
        %p343 = pneg %p151
        %p344 = pneg %p148
        %p345 = pneg %p172
        %p346 = pneg %p169
        %p347 = pneg %p193
        %p348 = pneg %p190
        %p349 = pneg %p214
        %p350 = pneg %p211
        %p351 = pneg %p240
        %p352 = pneg %p237
        %s353 = sand.u32 %s227, 1
        %s354 = scalar_lea.sflag [#allocation4], %s353
        %s355 = sand.u32 %s227, 1
        %s356 = smul.addr %s355, 16
        %s357 = scalar_lea.vmem [#allocation7], %s356
        %p358 = scmp.lt.s32.totalorder %s25, 1
        %s359 = scalar_select %p358, %s25, 1
        %s360 = smul.addr %s359, 2
        %s361 = smul.addr %s360, 8
        %s362 = scalar_lea.vmem %s0, %s361
        %v363 = vld [vmem:[%s362] sm:$0xff]
        %v364 = vld [vmem:[%s362 + $0x8] sm:$0xff]
        %v365 = vld [vmem:[#allocation2] sm:$0x1]
        %v366 = vld [vmem:[%s2] sm:$0x1]
        %vm367 = vcmask 261120
        %v368 = vsel %vm367, %v363, 0.0
        %369 = vadd.xlane.f32.xlu0 %v368
        %v370 = vpop.xlane.xlu0 %369
        %v371 = vsel %vm367, %v364, 0.0
        %372 = vadd.xlane.f32.xlu0 %v371
        %v373 = vpop.xlane.xlu0 %372
        %v374 = vrcp.pop 32.0
        %v375 = vmul.f32 32.0, %v374
        %v376 = vsub.f32 1.0, %v375
        %v377 = vmul.f32 %v374, %v376
        %v378 = vadd.f32 %v374, %v377
        %vm379 = vweird.f32 %v374
        %v380 = vsel %vm379, %v374, %v378
        %v381 = vmul.f32 %v370, %v380
        %v382 = vmul.f32 %v373, %v380
        %v383 = vsub.f32 %v363, %v381
        %v384 = vsub.f32 %v364, %v382
        %v385 = vmul.f32 %v383, %v383
        %v386 = vmul.f32 %v384, %v384
        %v387 = vsel %vm367, %v385, 0.0
        %388 = vadd.xlane.f32.xlu0 %v387
        %v389 = vpop.xlane.xlu0 %388
        %v390 = vsel %vm367, %v386, 0.0
        %391 = vadd.xlane.f32.xlu0 %v390
        %v392 = vpop.xlane.xlu0 %391
        %v393 = vmul.f32 %v389, %v380
        %v394 = vmul.f32 %v392, %v380
        %v395 = vadd.f32 %v393, 1e-05
        %v396 = vadd.f32 %v394, 1e-05
        %v397 = vrsqrt.pop %v395
        %v398 = vmul.f32 %v397, %v395
        %v399 = vmul.f32 %v398, %v397
        %v400 = vmul.f32 0.5, %v399
        %v401 = vsub.f32 1.5, %v400
        %v402 = vmul.f32 %v397, %v401
        %vm403 = vweird.f32 %v395
        %vm404 = vweird.f32 %v397
        %vm405 = vmor %vm403, %vm404
        %v406 = vsel %vm405, %v397, %v402
        %v407 = vrsqrt.pop %v396
        %v408 = vmul.f32 %v407, %v396
        %v409 = vmul.f32 %v408, %v407
        %v410 = vmul.f32 0.5, %v409
        %v411 = vsub.f32 1.5, %v410
        %v412 = vmul.f32 %v407, %v411
        %vm413 = vweird.f32 %v396
        %vm414 = vweird.f32 %v407
        %vm415 = vmor %vm413, %vm414
        %v416 = vsel %vm415, %v407, %v412
        %v417 = vmul.f32 %v383, %v406
        %v418 = vmul.f32 %v384, %v416
        %v420 = vperm.slane %v365, 0
        %v422 = vmul.f32 %v417, %v420
        %v423 = vmul.f32 %v418, %v420
        %v425 = vperm.slane %v366, 0
        %v427 = vadd.f32 %v422, %v425
        %v428 = vadd.f32 %v423, %v425
        %v429 = vld [vmem:[%s3] sm:$0xff]
        %v430 = vld [vmem:[%s3 + $0x8] sm:$0xff]
        %v431 = vld [vmem:[%s3 + $0x10] sm:$0xff]
        %v432 = vld [vmem:[%s3 + $0x18] sm:$0xff]
        %v434 = vsel %vm367, %v427, 0
        %v437 = vsel %vm367, %v428, 0
        %439 = vmatpush.msra.mxu0 0.0
        %440 = vmatpush.msra.mxu0 0.0
        %441 = vmatpush.msra.mxu0 0.0
        %442 = vmatpush.msra.mxu0 0.0
        %443 = vmatpush.msra.mxu0 0.0
        %444 = vmatpush.msra.mxu0 0.0
        %445 = vmatpush.msra.mxu0 0.0
        %446 = vmatpush.msra.mxu0 0.0
        %447 = vmatpush.msra.mxu0 0.0
        %448 = vmatpush.msra.mxu0 0.0
        %449 = vmatpush.msra.mxu0 0.0
        %450 = vmatpush.msra.mxu0 0.0
        %451 = vmatpush.msra.mxu0 %v432
        %452 = vmatpush.msra.mxu0 %v431
        %453 = vmatpush.msra.mxu0 %v430
        %454 = vmatpush.msra.mxu0 %v429
        %455 = vmatmul.f32.gmra.mxu0 %v434
        %v456 = vpop.f32.mrf.mxu0
        %v457 = vadd.f32 0.0, %v456
        %458 = vmatmul.f32.gmra.mxu0 %v437
        %v459 = vpop.f32.mrf.mxu0
        %v460 = vadd.f32 0.0, %v459
        %461 = vdwg.mxu0
        %464 = vrot.lane.b32.xlu0 %v457, 96
        %v465 = vpop.permute.xlu0 %464
        %466 = vrot.lane.b32.xlu0 %v460, 96
        %v467 = vpop.permute.xlu0 %466
        %vm468 = vcmask 130048
        %v469 = vsel %vm468, %v457, 0
        %v471 = vsel %vm468, %v460, 0
        %v473 = vsel %vm468, %v465, 0
        %v475 = vsel %vm468, %v467, 0
        %477 = vmatpush.xpose.msra.mxu0 0.0
        %478 = vmatpush.xpose.msra.mxu0 0.0
        %479 = vmatpush.xpose.msra.mxu0 0.0
        %480 = vmatpush.xpose.msra.mxu0 0.0
        %481 = vmatpush.xpose.msra.mxu0 0.0
        %482 = vmatpush.xpose.msra.mxu0 0.0
        %483 = vmatpush.xpose.msra.mxu0 0.0
        %484 = vmatpush.xpose.msra.mxu0 0.0
        %485 = vmatpush.xpose.msra.mxu0 0.0
        %486 = vmatpush.xpose.msra.mxu0 0.0
        %487 = vmatpush.xpose.msra.mxu0 0.0
        %488 = vmatpush.xpose.msra.mxu0 0.0
        %489 = vmatpush.xpose.msra.mxu0 0.0
        %490 = vmatpush.xpose.msra.mxu0 0.0
        %491 = vmatpush.xpose.msra.mxu0 %v475
        %492 = vmatpush.xpose.msra.mxu0 %v473
        %493 = vmatmul.f32.gmra.mxu0 %v469
        %v494 = vpop.f32.mrf.mxu0
        %v495 = vadd.f32 0.0, %v494
        %496 = vmatmul.f32.gmra.mxu0 %v471
        %v497 = vpop.f32.mrf.mxu0
        %v498 = vadd.f32 0.0, %v497
        %499 = vdwg.mxu0
        %v500 = vmul.f32 %v495, 0.25
        %v501 = vmul.f32 %v498, 0.25
        %v502 = vsel %vm468, %v500, -inf
        %503 = vmax.xlane.f32.xlu0 %v502
        %v504 = vpop.xlane.xlu0 %503
        %v505 = vsel %vm468, %v501, -inf
        %506 = vmax.xlane.f32.xlu0 %v505
        %v507 = vpop.xlane.xlu0 %506
        %v508 = vsub.f32 %v500, %v504
        %v509 = vsub.f32 %v501, %v507
        %v510 = vmul.f32 %v508, 1.442695
        %v511 = vpow.pop %v510
        %v512 = vmul.f32 %v509, 1.442695
        %v513 = vpow.pop %v512
        %v514 = vsel %vm468, %v511, 0.0
        %515 = vadd.xlane.f32.xlu0 %v514
        %v516 = vpop.xlane.xlu0 %515
        %v517 = vsel %vm468, %v513, 0.0
        %518 = vadd.xlane.f32.xlu0 %v517
        %v519 = vpop.xlane.xlu0 %518
        %v520 = vrcp.pop %v516
        %v521 = vmul.f32 %v516, %v520
        %v522 = vsub.f32 1.0, %v521
        %v523 = vmul.f32 %v520, %v522
        %v524 = vadd.f32 %v520, %v523
        %vm525 = vweird.f32 %v516
        %vm526 = vweird.f32 %v520
        %vm527 = vmor %vm525, %vm526
        %v528 = vsel %vm527, %v520, %v524
        %v529 = vand.u32 2147483647, %v516
        %vm530 = vcmp.eq.f32.partialorder %v529, 8.507059e+37
        %v531 = vand.u32 %v516, 2147483648
        %v532 = vor.u32 1.1754944e-38, %v531
        %v533 = vsel %vm530, %v532, %v528
        %v534 = vmul.f32 %v511, %v533
        %v535 = vrcp.pop %v519
        %v536 = vmul.f32 %v519, %v535
        %v537 = vsub.f32 1.0, %v536
        %v538 = vmul.f32 %v535, %v537
        %v539 = vadd.f32 %v535, %v538
        %vm540 = vweird.f32 %v519
        %vm541 = vweird.f32 %v535
        %vm542 = vmor %vm540, %vm541
        %v543 = vsel %vm542, %v535, %v539
        %v544 = vand.u32 2147483647, %v519
        %vm545 = vcmp.eq.f32.partialorder %v544, 8.507059e+37
        %v546 = vand.u32 %v519, 2147483648
        %v547 = vor.u32 1.1754944e-38, %v546
        %v548 = vsel %vm545, %v547, %v543
        %v549 = vmul.f32 %v513, %v548
        %550 = vrot.lane.b32.xlu0 %v457, 64
        %v551 = vpop.permute.xlu0 %550
        %552 = vrot.lane.b32.xlu0 %v460, 64
        %v553 = vpop.permute.xlu0 %552
        %v557 = vsel %vm468, %v534, 0
        %v560 = vsel %vm468, %v549, 0
        %562 = vmatpush.msra.mxu0 0.0
        %563 = vmatpush.msra.mxu0 0.0
        %564 = vmatpush.msra.mxu0 0.0
        %565 = vmatpush.msra.mxu0 0.0
        %566 = vmatpush.msra.mxu0 0.0
        %567 = vmatpush.msra.mxu0 0.0
        %568 = vmatpush.msra.mxu0 0.0
        %569 = vmatpush.msra.mxu0 0.0
        %570 = vmatpush.msra.mxu0 0.0
        %571 = vmatpush.msra.mxu0 0.0
        %572 = vmatpush.msra.mxu0 0.0
        %573 = vmatpush.msra.mxu0 0.0
        %574 = vmatpush.msra.mxu0 0.0
        %575 = vmatpush.msra.mxu0 0.0
        %576 = vmatpush.msra.mxu0 %v553
        %577 = vmatpush.msra.mxu0 %v551
        %578 = vmatmul.f32.gmra.mxu0 %v557
        %v579 = vpop.f32.mrf.mxu0
        %v580 = vadd.f32 0.0, %v579
        %581 = vmatmul.f32.gmra.mxu0 %v560
        %v582 = vpop.f32.mrf.mxu0
        %v583 = vadd.f32 0.0, %v582
        %584 = vdwg.mxu0
        %v585 = vld [vmem:[%s4] sm:$0xff]
        %v586 = vld [vmem:[%s4 + $0x8] sm:$0xff]
        %587 = vrot.lane.b32.xlu0 %v457, 112
        %v588 = vpop.permute.xlu0 %587
        %589 = vrot.lane.b32.xlu0 %v460, 112
        %v590 = vpop.permute.xlu0 %589
        %591 = vrot.lane.b32.xlu0 %v457, 80
        %v592 = vpop.permute.xlu0 %591
        %593 = vrot.lane.b32.xlu0 %v460, 80
        %v594 = vpop.permute.xlu0 %593
        %v595 = vsel %vm468, %v588, 0
        %v597 = vsel %vm468, %v590, 0
        %v599 = vsel %vm468, %v592, 0
        %v601 = vsel %vm468, %v594, 0
        %603 = vmatpush.xpose.msra.mxu0 0.0
        %604 = vmatpush.xpose.msra.mxu0 0.0
        %605 = vmatpush.xpose.msra.mxu0 0.0
        %606 = vmatpush.xpose.msra.mxu0 0.0
        %607 = vmatpush.xpose.msra.mxu0 0.0
        %608 = vmatpush.xpose.msra.mxu0 0.0
        %609 = vmatpush.xpose.msra.mxu0 0.0
        %610 = vmatpush.xpose.msra.mxu0 0.0
        %611 = vmatpush.xpose.msra.mxu0 0.0
        %612 = vmatpush.xpose.msra.mxu0 0.0
        %613 = vmatpush.xpose.msra.mxu0 0.0
        %614 = vmatpush.xpose.msra.mxu0 0.0
        %615 = vmatpush.xpose.msra.mxu0 0.0
        %616 = vmatpush.xpose.msra.mxu0 0.0
        %617 = vmatpush.xpose.msra.mxu0 %v601
        %618 = vmatpush.xpose.msra.mxu0 %v599
        %619 = vmatmul.f32.gmra.mxu0 %v595
        %v620 = vpop.f32.mrf.mxu0
        %v621 = vadd.f32 0.0, %v620
        %622 = vmatmul.f32.gmra.mxu0 %v597
        %v623 = vpop.f32.mrf.mxu0
        %v624 = vadd.f32 0.0, %v623
        %625 = vdwg.mxu0
        %v626 = vmul.f32 %v621, 0.25
        %v627 = vmul.f32 %v624, 0.25
        %v628 = vsel %vm468, %v626, -inf
        %629 = vmax.xlane.f32.xlu0 %v628
        %v630 = vpop.xlane.xlu0 %629
        %v631 = vsel %vm468, %v627, -inf
        %632 = vmax.xlane.f32.xlu0 %v631
        %v633 = vpop.xlane.xlu0 %632
        %v634 = vsub.f32 %v626, %v630
        %v635 = vsub.f32 %v627, %v633
        %v636 = vmul.f32 %v634, 1.442695
        %v637 = vpow.pop %v636
        %v638 = vmul.f32 %v635, 1.442695
        %v639 = vpow.pop %v638
        %v640 = vsel %vm468, %v637, 0.0
        %641 = vadd.xlane.f32.xlu0 %v640
        %v642 = vpop.xlane.xlu0 %641
        %v643 = vsel %vm468, %v639, 0.0
        %644 = vadd.xlane.f32.xlu0 %v643
        %v645 = vpop.xlane.xlu0 %644
        %v646 = vrcp.pop %v642
        %v647 = vmul.f32 %v642, %v646
        %v648 = vsub.f32 1.0, %v647
        %v649 = vmul.f32 %v646, %v648
        %v650 = vadd.f32 %v646, %v649
        %vm651 = vweird.f32 %v642
        %vm652 = vweird.f32 %v646
        %vm653 = vmor %vm651, %vm652
        %v654 = vsel %vm653, %v646, %v650
        %v655 = vand.u32 2147483647, %v642
        %vm656 = vcmp.eq.f32.partialorder %v655, 8.507059e+37
        %v657 = vand.u32 %v642, 2147483648
        %v658 = vor.u32 1.1754944e-38, %v657
        %v659 = vsel %vm656, %v658, %v654
        %v660 = vmul.f32 %v637, %v659
        %v661 = vrcp.pop %v645
        %v662 = vmul.f32 %v645, %v661
        %v663 = vsub.f32 1.0, %v662
        %v664 = vmul.f32 %v661, %v663
        %v665 = vadd.f32 %v661, %v664
        %vm666 = vweird.f32 %v645
        %vm667 = vweird.f32 %v661
        %vm668 = vmor %vm666, %vm667
        %v669 = vsel %vm668, %v661, %v665
        %v670 = vand.u32 2147483647, %v645
        %vm671 = vcmp.eq.f32.partialorder %v670, 8.507059e+37
        %v672 = vand.u32 %v645, 2147483648
        %v673 = vor.u32 1.1754944e-38, %v672
        %v674 = vsel %vm671, %v673, %v669
        %v675 = vmul.f32 %v639, %v674
        %676 = vrot.lane.b32.xlu0 %v457, 48
        %v677 = vpop.permute.xlu0 %676
        %678 = vrot.lane.b32.xlu0 %v460, 48
        %v679 = vpop.permute.xlu0 %678
        %v683 = vsel %vm468, %v660, 0
        %v686 = vsel %vm468, %v675, 0
        %688 = vmatpush.msra.mxu0 0.0
        %689 = vmatpush.msra.mxu0 0.0
        %690 = vmatpush.msra.mxu0 0.0
        %691 = vmatpush.msra.mxu0 0.0
        %692 = vmatpush.msra.mxu0 0.0
        %693 = vmatpush.msra.mxu0 0.0
        %694 = vmatpush.msra.mxu0 0.0
        %695 = vmatpush.msra.mxu0 0.0
        %696 = vmatpush.msra.mxu0 0.0
        %697 = vmatpush.msra.mxu0 0.0
        %698 = vmatpush.msra.mxu0 0.0
        %699 = vmatpush.msra.mxu0 0.0
        %700 = vmatpush.msra.mxu0 0.0
        %701 = vmatpush.msra.mxu0 0.0
        %702 = vmatpush.msra.mxu0 %v679
        %703 = vmatpush.msra.mxu0 %v677
        %704 = vmatmul.f32.gmra.mxu0 %v683
        %v705 = vpop.f32.mrf.mxu0
        %v706 = vadd.f32 0.0, %v705
        %707 = vmatmul.f32.gmra.mxu0 %v686
        %v708 = vpop.f32.mrf.mxu0
        %v709 = vadd.f32 0.0, %v708
        %710 = vdwg.mxu0
        %v711 = vld [vmem:[%s4 + $0x10] sm:$0xff]
        %v712 = vld [vmem:[%s4 + $0x18] sm:$0xff]
        %v714 = vsel %vm468, %v706, 0
        %v717 = vsel %vm468, %v709, 0
        %719 = vmatpush.msra.mxu0 0.0
        %720 = vmatpush.msra.mxu0 0.0
        %721 = vmatpush.msra.mxu0 0.0
        %722 = vmatpush.msra.mxu0 0.0
        %723 = vmatpush.msra.mxu0 0.0
        %724 = vmatpush.msra.mxu0 0.0
        %725 = vmatpush.msra.mxu0 0.0
        %726 = vmatpush.msra.mxu0 0.0
        %727 = vmatpush.msra.mxu0 0.0
        %728 = vmatpush.msra.mxu0 0.0
        %729 = vmatpush.msra.mxu0 0.0
        %730 = vmatpush.msra.mxu0 0.0
        %731 = vmatpush.msra.mxu0 0.0
        %732 = vmatpush.msra.mxu0 0.0
        %733 = vmatpush.msra.mxu0 %v712
        %734 = vmatpush.msra.mxu0 %v711
        %735 = vmatmul.f32.gmra.mxu0 %v714
        %v736 = vpop.f32.mrf.mxu0
        %v737 = vadd.f32 0.0, %v736
        %738 = vmatmul.f32.gmra.mxu0 %v717
        %v739 = vpop.f32.mrf.mxu0
        %v740 = vadd.f32 0.0, %v739
        %741 = vdwg.mxu0
        %v743 = vsel %vm468, %v580, 0
        %v746 = vsel %vm468, %v583, 0
        %748 = vmatpush.msra.mxu0 0.0
        %749 = vmatpush.msra.mxu0 0.0
        %750 = vmatpush.msra.mxu0 0.0
        %751 = vmatpush.msra.mxu0 0.0
        %752 = vmatpush.msra.mxu0 0.0
        %753 = vmatpush.msra.mxu0 0.0
        %754 = vmatpush.msra.mxu0 0.0
        %755 = vmatpush.msra.mxu0 0.0
        %756 = vmatpush.msra.mxu0 0.0
        %757 = vmatpush.msra.mxu0 0.0
        %758 = vmatpush.msra.mxu0 0.0
        %759 = vmatpush.msra.mxu0 0.0
        %760 = vmatpush.msra.mxu0 0.0
        %761 = vmatpush.msra.mxu0 0.0
        %762 = vmatpush.msra.mxu0 %v586
        %763 = vmatpush.msra.mxu0 %v585
        %764 = vmatmul.f32.gmra.mxu0 %v743
        %v765 = vpop.f32.mrf.mxu0
        %v766 = vadd.f32 %v737, %v765
        %767 = vmatmul.f32.gmra.mxu0 %v746
        %v768 = vpop.f32.mrf.mxu0
        %v769 = vadd.f32 %v740, %v768
        %770 = vdwg.mxu0
        %v771 = vadd.f32 %v363, %v766
        %v772 = vadd.f32 %v364, %v769
        %v773 = vld [vmem:[%s5] sm:$0x1]
        %v774 = vld [vmem:[%s6] sm:$0x1]
        %v775 = vsel %vm367, %v771, 0.0
        %776 = vadd.xlane.f32.xlu0 %v775
        %v777 = vpop.xlane.xlu0 %776
        %v778 = vsel %vm367, %v772, 0.0
        %779 = vadd.xlane.f32.xlu0 %v778
        %v780 = vpop.xlane.xlu0 %779
        %v781 = vmul.f32 %v777, %v380
        %v782 = vmul.f32 %v780, %v380
        %v783 = vsub.f32 %v771, %v781
        %v784 = vsub.f32 %v772, %v782
        %v785 = vmul.f32 %v783, %v783
        %v786 = vmul.f32 %v784, %v784
        %v787 = vsel %vm367, %v785, 0.0
        %788 = vadd.xlane.f32.xlu0 %v787
        %v789 = vpop.xlane.xlu0 %788
        %v790 = vsel %vm367, %v786, 0.0
        %791 = vadd.xlane.f32.xlu0 %v790
        %v792 = vpop.xlane.xlu0 %791
        %v793 = vmul.f32 %v789, %v380
        %v794 = vmul.f32 %v792, %v380
        %v795 = vadd.f32 %v793, 1e-05
        %v796 = vadd.f32 %v794, 1e-05
        %v797 = vrsqrt.pop %v795
        %v798 = vmul.f32 %v797, %v795
        %v799 = vmul.f32 %v798, %v797
        %v800 = vmul.f32 0.5, %v799
        %v801 = vsub.f32 1.5, %v800
        %v802 = vmul.f32 %v797, %v801
        %vm803 = vweird.f32 %v795
        %vm804 = vweird.f32 %v797
        %vm805 = vmor %vm803, %vm804
        %v806 = vsel %vm805, %v797, %v802
        %v807 = vrsqrt.pop %v796
        %v808 = vmul.f32 %v807, %v796
        %v809 = vmul.f32 %v808, %v807
        %v810 = vmul.f32 0.5, %v809
        %v811 = vsub.f32 1.5, %v810
        %v812 = vmul.f32 %v807, %v811
        %vm813 = vweird.f32 %v796
        %vm814 = vweird.f32 %v807
        %vm815 = vmor %vm813, %vm814
        %v816 = vsel %vm815, %v807, %v812
        %v817 = vmul.f32 %v783, %v806
        %v818 = vmul.f32 %v784, %v816
        %v820 = vperm.slane %v773, 0
        %v822 = vmul.f32 %v817, %v820
        %v823 = vmul.f32 %v818, %v820
        %v825 = vperm.slane %v774, 0
        %v827 = vadd.f32 %v822, %v825
        %v828 = vadd.f32 %v823, %v825
        %v829 = vld [vmem:[#allocation5] sm:$0xff]
        %v830 = vld [vmem:[#allocation5 + $0x8] sm:$0xff]
        %v831 = vld [vmem:[#allocation5 + $0x10] sm:$0xff]
        %v832 = vld [vmem:[#allocation5 + $0x18] sm:$0xff]
        %v834 = vsel %vm367, %v827, 0
        %v837 = vsel %vm367, %v828, 0
        %839 = vmatpush.msra.mxu0 0.0
        %840 = vmatpush.msra.mxu0 0.0
        %841 = vmatpush.msra.mxu0 0.0
        %842 = vmatpush.msra.mxu0 0.0
        %843 = vmatpush.msra.mxu0 0.0
        %844 = vmatpush.msra.mxu0 0.0
        %845 = vmatpush.msra.mxu0 0.0
        %846 = vmatpush.msra.mxu0 0.0
        %847 = vmatpush.msra.mxu0 0.0
        %848 = vmatpush.msra.mxu0 0.0
        %849 = vmatpush.msra.mxu0 0.0
        %850 = vmatpush.msra.mxu0 0.0
        %851 = vmatpush.msra.mxu0 %v832
        %852 = vmatpush.msra.mxu0 %v831
        %853 = vmatpush.msra.mxu0 %v830
        %854 = vmatpush.msra.mxu0 %v829
        %855 = vmatmul.f32.gmra.mxu0 %v834
        %v856 = vpop.f32.mrf.mxu0
        %v857 = vadd.f32 0.0, %v856
        %858 = vmatmul.f32.gmra.mxu0 %v837
        %v859 = vpop.f32.mrf.mxu0
        %v860 = vadd.f32 0.0, %v859
        %861 = vdwg.mxu0
        %v862 = vmax.f32 %v857, 0.0
        %v863 = vmax.f32 %v860, 0.0
        %v864 = vld [vmem:[%s8] sm:$0xff]
        %v865 = vld [vmem:[%s8 + $0x8] sm:$0xff]
        %v866 = vld [vmem:[%s8 + $0x10] sm:$0xff]
        %v867 = vld [vmem:[%s8 + $0x18] sm:$0xff]
        %v868 = vld [vmem:[%s8 + $0x20] sm:$0xff]
        %v869 = vld [vmem:[%s8 + $0x28] sm:$0xff]
        %v870 = vld [vmem:[%s8 + $0x30] sm:$0xff]
        %v871 = vld [vmem:[%s8 + $0x38] sm:$0xff]
        %vm872 = vcmask 523264
        %v874 = vsel %vm872, %v862, 0
        %v877 = vsel %vm872, %v863, 0
        %879 = vmatpush.msra.mxu0 0.0
        %880 = vmatpush.msra.mxu0 0.0
        %881 = vmatpush.msra.mxu0 0.0
        %882 = vmatpush.msra.mxu0 0.0
        %883 = vmatpush.msra.mxu0 0.0
        %884 = vmatpush.msra.mxu0 0.0
        %885 = vmatpush.msra.mxu0 0.0
        %886 = vmatpush.msra.mxu0 0.0
        %887 = vmatpush.msra.mxu0 %v871
        %888 = vmatpush.msra.mxu0 %v870
        %889 = vmatpush.msra.mxu0 %v869
        %890 = vmatpush.msra.mxu0 %v868
        %891 = vmatpush.msra.mxu0 %v867
        %892 = vmatpush.msra.mxu0 %v866
        %893 = vmatpush.msra.mxu0 %v865
        %894 = vmatpush.msra.mxu0 %v864
        %895 = vmatmul.f32.gmra.mxu0 %v874
        %v896 = vpop.f32.mrf.mxu0
        %v897 = vadd.f32 0.0, %v896
        %898 = vmatmul.f32.gmra.mxu0 %v877
        %v899 = vpop.f32.mrf.mxu0
        %v900 = vadd.f32 0.0, %v899
        %901 = vdwg.mxu0
        %v902 = vadd.f32 %v771, %v897
        %v903 = vadd.f32 %v772, %v900
        %904 = vst.msk [vmem:[%s357] sm:$0xff] %vm367, %v902
        %905 = vst.msk [vmem:[%s357 + $0x8] sm:$0xff] %vm367, %v903
        %s906 = sand.u32 %s227, 1
        %s907 = scalar_lea.sflag [#allocation4], %s906
        %s908 = sand.u32 %s227, 1
        %s909 = smul.addr %s908, 16
        %s910 = scalar_lea.vmem [#allocation7], %s909
        // Predicated region
        $region65: #{tpu_custom_call.1} parent=55 // pred_check
          %p911 = pneg %p237
        $region66: #{tpu_custom_call.1} parent=55 // pred_check_branch
          %913 = sbr.rel (%p911) target = $region68
        $region67: #{tpu_custom_call.1} parent=55 // pred_region
          %915 = vsyncadd %s907, 0
          %s916 = smul.addr %s25, 2
          %s917 = smul.addr %s916, 8
          %s918 = scalar_lea.hbm %s9, %s917
          %s919 = sshll.u32 %s910, 4
          %s920 = int_to_ptr.vmem [resolvable:$true] %s919
          %s921 = sshll.u32 %s918, 4
          %s922 = int_to_ptr.hbm [resolvable:$true] %s921
          %927 = dma.vmem_to_hbm [thread:$0]  %s920, 256, %s922, %s907, 128, 128, 8
        $region68: #{tpu_custom_call.1} parent=55 // pred_fallthru
          _
      $region56: #{tpu_custom_call.1} parent=5 // pred_fallthru
        _
      %p928 = scmp.le.s32.totalorder 2, %s20
      // Predicated region
      $region69: #{tpu_custom_call.1} parent=5 // pred_check
        %p929 = pneg %p928
      $region70: #{tpu_custom_call.1} parent=5 // pred_check_branch
        %931 = sbr.rel (%p929) target = $region72
      $region71: #{tpu_custom_call.1} parent=5 // pred_region
        %s932 = ssub.s32 %s20, 2
        // Predicated region
        $region73: #{tpu_custom_call.1} parent=71 // pred_check
          %p933 = pneg %p243
        $region74: #{tpu_custom_call.1} parent=71 // pred_check_branch
          %935 = sbr.rel (%p933) target = $region76
        $region75: #{tpu_custom_call.1} parent=71 // pred_region
          %s936 = sand.u32 %s228, 1
          %s937 = scalar_lea.sflag [#allocation4], %s936
          %s938 = sand.u32 %s228, 1
          %s939 = smul.addr %s938, 16
          %s940 = scalar_lea.vmem [#allocation7], %s939
          %942 = dma.done %s937, 256
        $region76: #{tpu_custom_call.1} parent=71 // pred_fallthru
          _
      $region72: #{tpu_custom_call.1} parent=5 // pred_fallthru
        _
    $region6: #{tpu_custom_call.1} parent=1 // loop_footer
      %s24 = sadd.s32 1, %s20
    $region7: #{tpu_custom_call.1} parent=1 // loop_footer_branch
      %19 = sbr.rel target = $region3
    $region8: #{tpu_custom_call.1} parent=1 // loop_exit
      _
    %943 = vsyncpa [#allocation3], 1
    %s944 = scalar_lea.sflag [#allocation3], 1
    %945 = vsyncpa %s944, 1
    %946 = vsyncpa [#allocation6], 1
    %947 = vsyncpa [#allocation4], 1
    %s948 = scalar_lea.sflag [#allocation4], 1
    %949 = vsyncpa %s948, 1

</llo_original>
